<compile_context>
chip_gen: v7x
topology: tpu7x:2x2x1
jax: 0.10.0
libtpu: 0.0.40
codegen_flags: <defaults>
</compile_context>

<pallas_src>
import jax
import jax.numpy as jnp
from jax.experimental import pallas as pl
from jax.experimental.pallas import tpu as pltpu


# ----------------------------------------------------------------------------
# Kernel
# ----------------------------------------------------------------------------
def aff_kernel(x_ref, r_ref, w1_ref, b1_ref, w2_ref, b2_ref, o_ref):
    # Block shapes (Cp = 2*C = 128 lane-dense packed channels, Cip = 2*Ci):
    #   x_ref / r_ref / o_ref : (Nb, HWp, Cp)   bf16
    #   w1_ref: (2, Cp, Cip)  bf16  [0]=local, [1]=global  (BN folded, block-diag)
    #   b1_ref: (2, 1, Cip)   f32
    #   w2_ref: (2, Cip, Cp)  bf16  (block-diag, pre-scaled by 1/2 for tanh fuse)
    #   b2_ref: (1, Cp)       f32   (combined local+global bias, pre-scaled by 1/2)
    Nb, HWp, Cp = x_ref.shape
    C = Cp // 2

    # Element-wise math in bf16 (v6e/v7x have bf16 VPU; halves vreg pressure).
    x = x_ref[...]
    r = r_ref[...]
    xa = x + r                      # (Nb, HWp, Cp) bf16, reused in the fuse
    d = x - r                       # (Nb, HWp, Cp) bf16

    # ---- local attention branch: conv1x1 -> (BN folded) -> ReLU -> conv1x1 ----
    xa_flat = xa.reshape(Nb * HWp, Cp)            # one big MXU matmul
    h = jnp.dot(xa_flat, w1_ref[0], preferred_element_type=jnp.float32)
    h = jnp.maximum(h + b1_ref[0], 0.0)           # (Nb*HWp, Cip) f32
    xl = jnp.dot(h.astype(jnp.bfloat16), w2_ref[0],
                 preferred_element_type=jnp.float32)          # (Nb*HWp, Cp)
    xl = xl.reshape(Nb, HWp, Cp)

    # ---- global attention branch: GAP -> conv1x1 -> ReLU -> conv1x1 -----------
    # True spatial mean: packed layout holds [even-row mean | odd-row mean],
    # average the two halves (f32 accumulation), then duplicate across both
    # packed halves so the block-diag weights produce the value for every lane.
    mp = jnp.mean(xa, axis=1, dtype=jnp.float32)              # (Nb, Cp)
    m = 0.5 * (mp[:, :C] + mp[:, C:])                         # (Nb, C)
    m_dup = jnp.concatenate([m, m], axis=-1).astype(jnp.bfloat16)  # (Nb, Cp)
    g = jnp.dot(m_dup, w1_ref[1], preferred_element_type=jnp.float32)
    g = jnp.maximum(g + b1_ref[1], 0.0)                       # (Nb, Cip)
    xg = jnp.dot(g.astype(jnp.bfloat16), w2_ref[1],
                 preferred_element_type=jnp.float32)          # (Nb, Cp)

    # ---- fuse (exact tanh rewrite): out = xa + (x - r) * tanh(z/2) ------------
    # w2/b2 already carry the 1/2 scale, so xl + xg + b2 IS z/2.
    s = xg + b2_ref[...]                                      # tiny (Nb, Cp) add
    t = jnp.tanh(xl + s[:, None, :])                          # f32, EUP slot
    o_ref[...] = (xa + d * t.astype(jnp.bfloat16)).astype(o_ref.dtype)


# ----------------------------------------------------------------------------
# Wrapper
# ----------------------------------------------------------------------------
def _choose_block_n(N, HWp, Cp, *, target_block_bytes=2 << 20,
                    vmem_budget_bytes=24 << 20):
    """Pick images per grid step: target ~1-4 MiB bf16 blocks, capped at N,
    and budgeted against v7x's 64 MiB VMEM (double-buffered I/O + f32 temps)."""
    blk_img = HWp * Cp * 2                      # bf16 bytes per image

    def step_bytes(bn):
        blk = bn * blk_img
        io = 2 * 3 * blk                        # double-buffered x, r, out (bf16)
        body = 2 * blk + 3 * 2 * blk            # bf16 xa,d + ~3 f32 temps (xl,z,t)
        return io + body

    bn = max(1, min(N, target_block_bytes // blk_img or 1))
    while bn > 1 and (N % bn != 0 or step_bytes(bn) > vmem_budget_bytes):
        bn -= 1
    return bn


def aff_forward(x, residual, params, *, block_n=None):
    """x, residual: (N, HW, C) bf16 (channels-last).  params: see make_params."""
    N, HW, C = x.shape
    assert HW % 2 == 0, "HW must be even for the lane-dense repack"
    HWp, Cp = HW // 2, 2 * C
    w1, b1, w2, b2 = params["w1"], params["b1"], params["w2"], params["b2"]
    Cip = w1.shape[2]
    Ci = Cip // 2
    assert w1.shape == (2, Cp, Cip) and w2.shape == (2, Cip, Cp)

    # Lane-dense repack: contiguous reshape, free in XLA.
    xp = x.reshape(N, HWp, Cp)
    rp = residual.reshape(N, HWp, Cp)

    if block_n is None:
        block_n = _choose_block_n(N, HWp, Cp)
    assert N % block_n == 0, "block_n must divide N"

    data_spec = pl.BlockSpec((block_n, HWp, Cp), lambda n: (n, 0, 0))
    full = lambda shape: pl.BlockSpec(shape, lambda n: (0,) * len(shape))

    out = pl.pallas_call(
        aff_kernel,
        out_shape=jax.ShapeDtypeStruct((N, HWp, Cp), jnp.bfloat16),
        grid_spec=pltpu.PrefetchScalarGridSpec(
            num_scalar_prefetch=0,
            grid=(N // block_n,),
            in_specs=[
                data_spec, data_spec,
                full(w1.shape),   # (2, Cp, Cip)
                full(b1.shape),   # (2, 1, Cip)
                full(w2.shape),   # (2, Cip, Cp)
                full(b2.shape),   # (1, Cp)
            ],
            out_specs=data_spec,
        ),
        compiler_params=pltpu.CompilerParams(
            dimension_semantics=("parallel",),
            vmem_limit_bytes=32 * 1024 * 1024),
        cost_estimate=pl.CostEstimate(
            flops=4 * N * HW * C * Ci,          # two CxCi matmuls per pixel
            transcendentals=N * HW * C,         # one tanh per element
            bytes_accessed=3 * N * HW * C * 2), # x, r, out in bf16
    )(xp, rp, w1, b1, w2, b2)

    return out.reshape(N, HW, C)


# ----------------------------------------------------------------------------
# Parameter construction (eval-mode BN folded, packed for the kernel)
# ----------------------------------------------------------------------------
def fold_conv_bn(w, conv_b, gamma, beta, mean, var, eps=1e-5):
    """y = BN(x @ W + b) == x @ (W*s) + ((b - mean)*s + beta), s = gamma/sqrt(var+eps)."""
    s = gamma / jnp.sqrt(var + eps)
    return w * s[None, :], (conv_b - mean) * s + beta


def _block_diag(w):
    z = jnp.zeros_like(w)
    return jnp.concatenate(
        [jnp.concatenate([w, z], axis=1), jnp.concatenate([z, w], axis=1)], axis=0)


def pack_params(ref, w_dtype=jnp.bfloat16):
    """Pack folded weights into kernel layout: block-diag for the 128-lane
    repack, 1/2 folded into w2/b2 for the tanh fuse, biases combined."""
    w1 = jnp.stack([_block_diag(ref["w1l"]),
                    _block_diag(ref["w1g"])]).astype(w_dtype)          # (2, 2C, 2Ci)
    b1 = jnp.stack([jnp.concatenate([ref["b1l"], ref["b1l"]]),
                    jnp.concatenate([ref["b1g"], ref["b1g"]])])[:, None, :] \
            .astype(jnp.float32)                                       # (2, 1, 2Ci)
    w2 = jnp.stack([_block_diag(0.5 * ref["w2l"]),
                    _block_diag(0.5 * ref["w2g"])]).astype(w_dtype)    # (2, 2Ci, 2C)
    b2h = 0.5 * (ref["b2l"] + ref["b2g"])
    b2 = jnp.concatenate([b2h, b2h])[None, :].astype(jnp.float32)      # (1, 2C)
    return dict(w1=w1, b1=b1, w2=w2, b2=b2)


def make_params(key, channels, r=4, w_dtype=jnp.bfloat16):
    inter_channels = channels // r
    ks = jax.random.split(key, 8)

    def conv_bn(k0, k1, cin, cout):
        w = jax.random.normal(k0, (cin, cout), jnp.float32) * 0.1   # (Cin, Cout): y = x @ W
        b = jax.random.normal(k1, (cout,), jnp.float32) * 0.05
        kk = jax.random.split(k1, 4)
        gamma = 1.0 + 0.1 * jax.random.normal(kk[0], (cout,), jnp.float32)
        beta = 0.05 * jax.random.normal(kk[1], (cout,), jnp.float32)
        mean = 0.05 * jax.random.normal(kk[2], (cout,), jnp.float32)
        var = jnp.abs(jax.random.normal(kk[3], (cout,), jnp.float32)) + 0.5
        return fold_conv_bn(w, b, gamma, beta, mean, var)

    w1l, b1l = conv_bn(ks[0], ks[1], channels, inter_channels)
    w2l, b2l = conv_bn(ks[2], ks[3], inter_channels, channels)
    w1g, b1g = conv_bn(ks[4], ks[5], channels, inter_channels)
    w2g, b2g = conv_bn(ks[6], ks[7], inter_channels, channels)

    ref = dict(w1l=w1l, b1l=b1l, w2l=w2l, b2l=b2l,
               w1g=w1g, b1g=b1g, w2g=w2g, b2g=b2g)
    return pack_params(ref, w_dtype), ref


# ----------------------------------------------------------------------------
# Pure-JAX f32 reference (original module semantics, eval-mode BN folded)
# ----------------------------------------------------------------------------
def aff_reference(x, residual, p):
    x = x.astype(jnp.float32)
    r = residual.astype(jnp.float32)
    xa = x + r
    xl = jnp.maximum(xa @ p["w1l"] + p["b1l"], 0.0) @ p["w2l"] + p["b2l"]
    m = jnp.mean(xa, axis=1, keepdims=True)
    xg = jnp.maximum(m @ p["w1g"] + p["b1g"], 0.0) @ p["w2g"] + p["b2g"]
    wei = jax.nn.sigmoid(xl + xg)
    return 2.0 * x * wei + 2.0 * r * (1.0 - wei)


if __name__ == "__main__":
    # AFF(channels=64, r=4) -> inter_channels=16; PyTorch input NCHW (2, 64, 8, 8).
    N, C, H, W = 2, 64, 8, 8
    HW = H * W

    key = jax.random.PRNGKey(0)
    kx, kr, kp = jax.random.split(key, 3)
    # Generated directly in kernel layout (N, H*W, C) == transpose/reshape of NCHW.
    x = jax.random.normal(kx, (N, HW, C), jnp.float32).astype(jnp.bfloat16)
    residual = jax.random.normal(kr, (N, HW, C), jnp.float32).astype(jnp.bfloat16)
    params, ref_params = make_params(kp, C, r=4)

    out = jax.block_until_ready(aff_forward(x, residual, params))
    assert out.shape == (N, HW, C)
    assert out.dtype == jnp.bfloat16

    ref = aff_reference(x, residual, ref_params)
    # bf16 storage + bf16 MXU/VPU inputs -> loose tolerance vs f32 reference.
    assert jnp.allclose(out.astype(jnp.float32), ref, atol=1e-1, rtol=5e-2), \
        "mismatch vs reference"

    print("KERNEL_OK")
</pallas_src>

<mosaic_0001>
module attributes {stable_mosaic.version = 11 : i64} {
  func.func @aff_kernel(%arg0: i32, %arg1: memref<2x32x128xbf16, #tpu.memory_space<vmem>>, %arg2: memref<2x32x128xbf16, #tpu.memory_space<vmem>>, %arg3: memref<2x128x32xbf16, #tpu.memory_space<vmem>>, %arg4: memref<2x1x32xf32, #tpu.memory_space<vmem>>, %arg5: memref<2x32x128xbf16, #tpu.memory_space<vmem>>, %arg6: memref<1x128xf32, #tpu.memory_space<vmem>>, %arg7: memref<2x32x128xbf16, #tpu.memory_space<vmem>>) attributes {dimension_semantics = [#tpu.dimension_semantics<parallel>], iteration_bounds = array<i64: 1>, scalar_prefetch = 0 : i64, scratch_operands = 0 : i64, tpu.core_type = #tpu.core_type<tc>, window_params = [{transform_indices = @transform_0, window_bounds = array<i64: 2, 32, 128>}, {transform_indices = @transform_1, window_bounds = array<i64: 2, 32, 128>}, {pipeline_mode = #tpu.pipeline_mode<synchronous>, transform_indices = @transform_2, window_bounds = array<i64: 2, 128, 32>}, {pipeline_mode = #tpu.pipeline_mode<synchronous>, transform_indices = @transform_3, window_bounds = array<i64: 2, 1, 32>}, {pipeline_mode = #tpu.pipeline_mode<synchronous>, transform_indices = @transform_4, window_bounds = array<i64: 2, 32, 128>}, {pipeline_mode = #tpu.pipeline_mode<synchronous>, transform_indices = @transform_5, window_bounds = array<i64: 1, 128>}, {transform_indices = @transform_6, window_bounds = array<i64: 2, 32, 128>}]} {
    %c0 = arith.constant 0 : index
    %c0_0 = arith.constant 0 : index
    %c0_1 = arith.constant 0 : index
    %0 = vector.load %arg1[%c0, %c0_0, %c0_1] : memref<2x32x128xbf16, #tpu.memory_space<vmem>>, vector<2x32x128xbf16>
    %c0_2 = arith.constant 0 : index
    %c0_3 = arith.constant 0 : index
    %c0_4 = arith.constant 0 : index
    %1 = vector.load %arg2[%c0_2, %c0_3, %c0_4] : memref<2x32x128xbf16, #tpu.memory_space<vmem>>, vector<2x32x128xbf16>
    %2 = arith.addf %0, %1 : vector<2x32x128xbf16>
    %3 = arith.subf %0, %1 : vector<2x32x128xbf16>
    %4 = vector.shape_cast %2 : vector<2x32x128xbf16> to vector<64x128xbf16>
    %c0_5 = arith.constant 0 : index
    %c0_6 = arith.constant 0 : index
    %c0_7 = arith.constant 0 : index
    %5 = vector.load %arg3[%c0_5, %c0_6, %c0_7] : memref<2x128x32xbf16, #tpu.memory_space<vmem>>, vector<1x128x32xbf16>
    %6 = vector.shape_cast %5 : vector<1x128x32xbf16> to vector<128x32xbf16>
    %cst = arith.constant dense<0.000000e+00> : vector<64x32xf32>
    %7 = tpu.matmul %4, %6, %cst {dimension_numbers = #tpu.dot_dimension_numbers<[1], [0], [0], [1], [0, 0, 1, 1], [], []>} : vector<64x128xbf16>, vector<128x32xbf16>, vector<64x32xf32> -> vector<64x32xf32>
    %c0_8 = arith.constant 0 : index
    %c0_9 = arith.constant 0 : index
    %c0_10 = arith.constant 0 : index
    %8 = vector.load %arg4[%c0_8, %c0_9, %c0_10] : memref<2x1x32xf32, #tpu.memory_space<vmem>>, vector<1x1x32xf32>
    %9 = vector.shape_cast %8 : vector<1x1x32xf32> to vector<1x32xf32>
    %10 = vector.broadcast %9 : vector<1x32xf32> to vector<64x32xf32>
    %11 = arith.addf %7, %10 : vector<64x32xf32>
    %cst_11 = arith.constant 0.000000e+00 : f32
    %12 = vector.broadcast %cst_11 : f32 to vector<64x32xf32>
    %13 = arith.maximumf %11, %12 : vector<64x32xf32>
    %14 = arith.truncf %13 : vector<64x32xf32> to vector<64x32xbf16>
    %c0_12 = arith.constant 0 : index
    %c0_13 = arith.constant 0 : index
    %c0_14 = arith.constant 0 : index
    %15 = vector.load %arg5[%c0_12, %c0_13, %c0_14] : memref<2x32x128xbf16, #tpu.memory_space<vmem>>, vector<1x32x128xbf16>
    %16 = vector.shape_cast %15 : vector<1x32x128xbf16> to vector<32x128xbf16>
    %cst_15 = arith.constant dense<0.000000e+00> : vector<64x128xf32>
    %17 = tpu.matmul %14, %16, %cst_15 {dimension_numbers = #tpu.dot_dimension_numbers<[1], [0], [0], [1], [0, 0, 1, 1], [], []>} : vector<64x32xbf16>, vector<32x128xbf16>, vector<64x128xf32> -> vector<64x128xf32>
    %18 = vector.shape_cast %17 : vector<64x128xf32> to vector<2x32x128xf32>
    %19 = arith.extf %2 : vector<2x32x128xbf16> to vector<2x32x128xf32>
    %cst_16 = arith.constant dense<0.000000e+00> : vector<2x128xf32>
    %20 = vector.multi_reduction <add>, %19, %cst_16 [1] : vector<2x32x128xf32> to vector<2x128xf32>
    %cst_17 = arith.constant 3.200000e+01 : f32
    %21 = vector.broadcast %cst_17 : f32 to vector<2x128xf32>
    %22 = arith.divf %20, %21 : vector<2x128xf32>
    %23 = vector.extract_strided_slice %22 {offsets = [0, 0], sizes = [2, 64], strides = [1, 1]} : vector<2x128xf32> to vector<2x64xf32>
    %24 = vector.extract_strided_slice %22 {offsets = [0, 64], sizes = [2, 64], strides = [1, 1]} : vector<2x128xf32> to vector<2x64xf32>
    %25 = arith.addf %23, %24 : vector<2x64xf32>
    %cst_18 = arith.constant 5.000000e-01 : f32
    %26 = vector.broadcast %cst_18 : f32 to vector<2x64xf32>
    %27 = arith.mulf %26, %25 : vector<2x64xf32>
    %28 = tpu.concatenate %27, %27 in 1 : vector<2x64xf32>, vector<2x64xf32> -> vector<2x128xf32>
    %29 = arith.truncf %28 : vector<2x128xf32> to vector<2x128xbf16>
    %c1 = arith.constant 1 : index
    %c0_19 = arith.constant 0 : index
    %c0_20 = arith.constant 0 : index
    %30 = vector.load %arg3[%c1, %c0_19, %c0_20] : memref<2x128x32xbf16, #tpu.memory_space<vmem>>, vector<1x128x32xbf16>
    %31 = vector.shape_cast %30 : vector<1x128x32xbf16> to vector<128x32xbf16>
    %cst_21 = arith.constant dense<0.000000e+00> : vector<2x32xf32>
    %32 = tpu.matmul %29, %31, %cst_21 {dimension_numbers = #tpu.dot_dimension_numbers<[1], [0], [0], [1], [0, 0, 1, 1], [], []>} : vector<2x128xbf16>, vector<128x32xbf16>, vector<2x32xf32> -> vector<2x32xf32>
    %c1_22 = arith.constant 1 : index
    %c0_23 = arith.constant 0 : index
    %c0_24 = arith.constant 0 : index
    %33 = vector.load %arg4[%c1_22, %c0_23, %c0_24] : memref<2x1x32xf32, #tpu.memory_space<vmem>>, vector<1x1x32xf32>
    %34 = vector.shape_cast %33 : vector<1x1x32xf32> to vector<1x32xf32>
    %35 = vector.broadcast %34 : vector<1x32xf32> to vector<2x32xf32>
    %36 = arith.addf %32, %35 : vector<2x32xf32>
    %cst_25 = arith.constant 0.000000e+00 : f32
    %37 = vector.broadcast %cst_25 : f32 to vector<2x32xf32>
    %38 = arith.maximumf %36, %37 : vector<2x32xf32>
    %39 = arith.truncf %38 : vector<2x32xf32> to vector<2x32xbf16>
    %c1_26 = arith.constant 1 : index
    %c0_27 = arith.constant 0 : index
    %c0_28 = arith.constant 0 : index
    %40 = vector.load %arg5[%c1_26, %c0_27, %c0_28] : memref<2x32x128xbf16, #tpu.memory_space<vmem>>, vector<1x32x128xbf16>
    %41 = vector.shape_cast %40 : vector<1x32x128xbf16> to vector<32x128xbf16>
    %cst_29 = arith.constant dense<0.000000e+00> : vector<2x128xf32>
    %42 = tpu.matmul %39, %41, %cst_29 {dimension_numbers = #tpu.dot_dimension_numbers<[1], [0], [0], [1], [0, 0, 1, 1], [], []>} : vector<2x32xbf16>, vector<32x128xbf16>, vector<2x128xf32> -> vector<2x128xf32>
    %c0_30 = arith.constant 0 : index
    %c0_31 = arith.constant 0 : index
    %43 = vector.load %arg6[%c0_30, %c0_31] : memref<1x128xf32, #tpu.memory_space<vmem>>, vector<1x128xf32>
    %44 = vector.broadcast %43 : vector<1x128xf32> to vector<2x128xf32>
    %45 = arith.addf %42, %44 : vector<2x128xf32>
    %46 = vector.shape_cast %45 : vector<2x128xf32> to vector<2x1x128xf32>
    %47 = vector.broadcast %46 : vector<2x1x128xf32> to vector<2x32x128xf32>
    %48 = arith.addf %18, %47 : vector<2x32x128xf32>
    %49 = math.tanh %48 : vector<2x32x128xf32>
    %50 = arith.truncf %49 : vector<2x32x128xf32> to vector<2x32x128xbf16>
    %51 = arith.mulf %3, %50 : vector<2x32x128xbf16>
    %52 = arith.addf %2, %51 : vector<2x32x128xbf16>
    %c0_32 = arith.constant 0 : index
    %c0_33 = arith.constant 0 : index
    %c0_34 = arith.constant 0 : index
    %53 = vector.load %arg7[%c0_32, %c0_33, %c0_34] : memref<2x32x128xbf16, #tpu.memory_space<vmem>>, vector<2x32x128xbf16>
    tpu.vector_store %arg7[%c0_32, %c0_33, %c0_34], %52 {strides = array<i32>} : memref<2x32x128xbf16, #tpu.memory_space<vmem>>, vector<2x32x128xbf16>,
    return
  }
  func.func @transform_0(%arg0: i32) -> (i32, i32, i32) {
    %c0_i32 = arith.constant 0 : i32
    %c0_i32_0 = arith.constant 0 : i32
    %c0_i32_1 = arith.constant 0 : i32
    return %arg0, %c0_i32, %c0_i32_0 : i32, i32, i32
  }
  func.func @transform_1(%arg0: i32) -> (i32, i32, i32) {
    %c0_i32 = arith.constant 0 : i32
    %c0_i32_0 = arith.constant 0 : i32
    %c0_i32_1 = arith.constant 0 : i32
    return %arg0, %c0_i32, %c0_i32_0 : i32, i32, i32
  }
  func.func @transform_2(%arg0: i32) -> (i32, i32, i32) {
    %c0_i32 = arith.constant 0 : i32
    %c0_i32_0 = arith.constant 0 : i32
    %c0_i32_1 = arith.constant 0 : i32
    %c0_i32_2 = arith.constant 0 : i32
    return %c0_i32, %c0_i32_0, %c0_i32_1 : i32, i32, i32
  }
  func.func @transform_3(%arg0: i32) -> (i32, i32, i32) {
    %c0_i32 = arith.constant 0 : i32
    %c0_i32_0 = arith.constant 0 : i32
    %c0_i32_1 = arith.constant 0 : i32
    %c0_i32_2 = arith.constant 0 : i32
    return %c0_i32, %c0_i32_0, %c0_i32_1 : i32, i32, i32
  }
  func.func @transform_4(%arg0: i32) -> (i32, i32, i32) {
    %c0_i32 = arith.constant 0 : i32
    %c0_i32_0 = arith.constant 0 : i32
    %c0_i32_1 = arith.constant 0 : i32
    %c0_i32_2 = arith.constant 0 : i32
    return %c0_i32, %c0_i32_0, %c0_i32_1 : i32, i32, i32
  }
  func.func @transform_5(%arg0: i32) -> (i32, i32) {
    %c0_i32 = arith.constant 0 : i32
    %c0_i32_0 = arith.constant 0 : i32
    %c0_i32_1 = arith.constant 0 : i32
    return %c0_i32, %c0_i32_0 : i32, i32
  }
  func.func @transform_6(%arg0: i32) -> (i32, i32, i32) {
    %c0_i32 = arith.constant 0 : i32
    %c0_i32_0 = arith.constant 0 : i32
    %c0_i32_1 = arith.constant 0 : i32
    return %arg0, %c0_i32, %c0_i32_0 : i32, i32, i32
  }
}

</mosaic_0001>

<llo_original>
// kernel: tpu_custom_call.1
$region0: #{tpu_custom_call.1}
  #allocation0 [shape = 'u32[]', space=smem, size = 0x4, offset = 0x4, fixed_abs, tag = 'smem constant byte address 0x4 - core index']
  #allocation1 [shape = 'u32[144,128]{1,0:T(1,128)}', space=vmem, size = 0x12000, scoped, tag = 'internal scratch']
  %s0 = inlined_call_operand.vmem [shape: bf16[2,32,128], index: 0, kind: input, shape index: {}]
  %s1 = inlined_call_operand.vmem [shape: bf16[2,32,128], index: 1, kind: input, shape index: {}]
  %s2 = inlined_call_operand.vmem [shape: bf16[2,128,32], index: 2, kind: input, shape index: {}]
  %s3 = inlined_call_operand.vmem [shape: f32[2,1,32], index: 3, kind: input, shape index: {}]
  %s4 = inlined_call_operand.vmem [shape: bf16[2,32,128], index: 4, kind: input, shape index: {}]
  %s5 = inlined_call_operand.vmem [shape: f32[1,128], index: 5, kind: input, shape index: {}]
  %s6 = inlined_call_operand.hbm [shape: bf16[2,32,128], index: 6, kind: output, shape index: {}]
  %s7 = sld [smem:[#allocation0]]
  $region34: #{tpu_custom_call.1} parent=0
    _
  %s9 = ssub.s32 1, %s7
  %s10 = scalar_select 0, %s9, %s7
  $region1: #{tpu_custom_call.1} parent=0
    #allocation2 [shape = 'u8[16384]{0}', space=vmem, size = 0x4000, scoped, tag = 'output window, operand 0, single buffered']
    #allocation3 [shape = 's32[1]{0}', space=sflag, size = 0x4, scoped, tag = 'scoped memory for tpu_custom_call.1']
    %11 = vsyncpa [#allocation3], 0
    // Predicated region
    $region2: #{tpu_custom_call.1} parent=1 // pred_check
      _
    $region3: #{tpu_custom_call.1} parent=1 // pred_check_branch
      %13 = sbr.rel (0) target = $region5
    $region4: #{tpu_custom_call.1} parent=1 // pred_region
      _
    $region5: #{tpu_custom_call.1} parent=1 // pred_fallthru
      _
    // Predicated region
    $region6: #{tpu_custom_call.1} parent=1 // pred_check
      _
    $region7: #{tpu_custom_call.1} parent=1 // pred_check_branch
      %15 = sbr.rel (0) target = $region9
    $region8: #{tpu_custom_call.1} parent=1 // pred_region
      _
    $region9: #{tpu_custom_call.1} parent=1 // pred_fallthru
      _
    // Predicated region
    $region10: #{tpu_custom_call.1} parent=1 // pred_check
      _
    $region11: #{tpu_custom_call.1} parent=1 // pred_check_branch
      %17 = sbr.rel (0) target = $region13
    $region12: #{tpu_custom_call.1} parent=1 // pred_region
      _
    $region13: #{tpu_custom_call.1} parent=1 // pred_fallthru
      _
    // Predicated region
    $region14: #{tpu_custom_call.1} parent=1 // pred_check
      _
    $region15: #{tpu_custom_call.1} parent=1 // pred_check_branch
      %19 = sbr.rel (0) target = $region17
    $region16: #{tpu_custom_call.1} parent=1 // pred_region
      _
    $region17: #{tpu_custom_call.1} parent=1 // pred_fallthru
      _
    // Predicated region
    $region18: #{tpu_custom_call.1} parent=1 // pred_check
      _
    $region19: #{tpu_custom_call.1} parent=1 // pred_check_branch
      %21 = sbr.rel (0) target = $region21
    $region20: #{tpu_custom_call.1} parent=1 // pred_region
      _
    $region21: #{tpu_custom_call.1} parent=1 // pred_fallthru
      _
    // Predicated region
    $region22: #{tpu_custom_call.1} parent=1 // pred_check
      _
    $region23: #{tpu_custom_call.1} parent=1 // pred_check_branch
      %23 = sbr.rel (0) target = $region25
    $region24: #{tpu_custom_call.1} parent=1 // pred_region
      _
    $region25: #{tpu_custom_call.1} parent=1 // pred_fallthru
      _
    %v25 = vld [vmem:[%s0] sm:$0xf]
    %v26 = vld [vmem:[%s0 + $0x4] sm:$0xf]
    %v27 = vld [vmem:[%s0 + $0x8] sm:$0xf]
    %v28 = vld [vmem:[%s0 + $0xc] sm:$0xf]
    %v29 = vld [vmem:[%s0 + $0x10] sm:$0xf]
    %v30 = vld [vmem:[%s0 + $0x14] sm:$0xf]
    %v31 = vld [vmem:[%s0 + $0x18] sm:$0xf]
    %v32 = vld [vmem:[%s0 + $0x1c] sm:$0xf]
    %v33 = vld [vmem:[%s1] sm:$0xf]
    %v34 = vld [vmem:[%s1 + $0x4] sm:$0xf]
    %v35 = vld [vmem:[%s1 + $0x8] sm:$0xf]
    %v36 = vld [vmem:[%s1 + $0xc] sm:$0xf]
    %v37 = vld [vmem:[%s1 + $0x10] sm:$0xf]
    %v38 = vld [vmem:[%s1 + $0x14] sm:$0xf]
    %v39 = vld [vmem:[%s1 + $0x18] sm:$0xf]
    %v40 = vld [vmem:[%s1 + $0x1c] sm:$0xf]
    %v41 = vadd.bf16 %v25, %v33
    %v42 = vadd.bf16 %v26, %v34
    %v43 = vadd.bf16 %v27, %v35
    %v44 = vadd.bf16 %v28, %v36
    %v45 = vadd.bf16 %v29, %v37
    %v46 = vadd.bf16 %v30, %v38
    %v47 = vadd.bf16 %v31, %v39
    %v48 = vadd.bf16 %v32, %v40
    %v49 = vsub.bf16 %v25, %v33
    %v50 = vsub.bf16 %v26, %v34
    %v51 = vsub.bf16 %v27, %v35
    %v52 = vsub.bf16 %v28, %v36
    %v53 = vsub.bf16 %v29, %v37
    %v54 = vsub.bf16 %v30, %v38
    %v55 = vsub.bf16 %v31, %v39
    %v56 = vsub.bf16 %v32, %v40
    %v57 = vld [vmem:[%s2] sm:$0xf]
    %v58 = vld [vmem:[%s2 + $0x4] sm:$0xf]
    %v59 = vld [vmem:[%s2 + $0x8] sm:$0xf]
    %v60 = vld [vmem:[%s2 + $0xc] sm:$0xf]
    %v61 = vld [vmem:[%s2 + $0x10] sm:$0xf]
    %v62 = vld [vmem:[%s2 + $0x14] sm:$0xf]
    %v63 = vld [vmem:[%s2 + $0x18] sm:$0xf]
    %v64 = vld [vmem:[%s2 + $0x1c] sm:$0xf]
    %v65 = vld [vmem:[%s2 + $0x20] sm:$0xf]
    %v66 = vld [vmem:[%s2 + $0x24] sm:$0xf]
    %v67 = vld [vmem:[%s2 + $0x28] sm:$0xf]
    %v68 = vld [vmem:[%s2 + $0x2c] sm:$0xf]
    %v69 = vld [vmem:[%s2 + $0x30] sm:$0xf]
    %v70 = vld [vmem:[%s2 + $0x34] sm:$0xf]
    %v71 = vld [vmem:[%s2 + $0x38] sm:$0xf]
    %v72 = vld [vmem:[%s2 + $0x3c] sm:$0xf]
    %v73 = vld [vmem:[%s3] sm:$0x1]
    %v75 = vlaneseq
    %v76 = vshrl.u32 %v75, 7
    %v77 = vsub.s32 0, %v76
    %v78 = vrot.slane %v73, %v77
    %v88 = vunpack.c.l.b16 %v41
    %v89 = vunpack.c.l.b16 %v42
    %v90 = vunpack.c.l.b16 %v43
    %v91 = vunpack.c.l.b16 %v44
    %v92 = vunpack.c.l.b16 %v45
    %v93 = vunpack.c.l.b16 %v46
    %v94 = vunpack.c.l.b16 %v47
    %v95 = vunpack.c.l.b16 %v48
    %v96 = vpack.c.b16 %v89, %v88
    %v97 = vpack.c.b16 %v91, %v90
    %v98 = vpack.c.b16 %v93, %v92
    %v99 = vpack.c.b16 %v95, %v94
    %v120 = vunpack.c.l.b16 %v57
    %v121 = vunpack.c.l.b16 %v58
    %v122 = vunpack.c.l.b16 %v59
    %v123 = vunpack.c.l.b16 %v60
    %v124 = vunpack.c.l.b16 %v61
    %v125 = vunpack.c.l.b16 %v62
    %v126 = vunpack.c.l.b16 %v63
    %v127 = vunpack.c.l.b16 %v64
    %v128 = vunpack.c.l.b16 %v65
    %v129 = vunpack.c.l.b16 %v66
    %v130 = vunpack.c.l.b16 %v67
    %v131 = vunpack.c.l.b16 %v68
    %v132 = vunpack.c.l.b16 %v69
    %v133 = vunpack.c.l.b16 %v70
    %v134 = vunpack.c.l.b16 %v71
    %v135 = vunpack.c.l.b16 %v72
    %v136 = vpack.c.b16 %v121, %v120
    %v137 = vpack.c.b16 %v123, %v122
    %v138 = vpack.c.b16 %v125, %v124
    %v139 = vpack.c.b16 %v127, %v126
    %v140 = vpack.c.b16 %v129, %v128
    %v141 = vpack.c.b16 %v131, %v130
    %v142 = vpack.c.b16 %v133, %v132
    %v143 = vpack.c.b16 %v135, %v134
    %152 = vmatprep.subr.bf16.mxu0 0
    %153 = vmatpush1.bf16.msra.mxu0 %v136
    %154 = vmatprep.subr.bf16.mxu0 0
    %155 = vmatpush1.bf16.msra.mxu0 %v137
    %156 = vmatprep.subr.bf16.mxu0 0
    %157 = vmatpush1.bf16.msra.mxu0 %v138
    %158 = vmatprep.subr.bf16.mxu0 0
    %159 = vmatpush1.bf16.msra.mxu0 %v139
    %160 = vmatprep.subr.bf16.mxu0 0
    %161 = vmatpush1.bf16.msra.mxu0 %v140
    %162 = vmatprep.subr.bf16.mxu0 0
    %163 = vmatpush1.bf16.msra.mxu0 %v141
    %164 = vmatprep.subr.bf16.mxu0 0
    %165 = vmatpush1.bf16.msra.mxu0 %v142
    %166 = vmatprep.subr.bf16.mxu0 0
    %167 = vmatpush1.bf16.msra.mxu0 %v143
    %168 = vmatprep.subr.bf16.mxu0 0
    %169 = vmatpush1.bf16.msra.mxu0 0
    %170 = vmatprep.subr.bf16.mxu0 0
    %171 = vmatpush1.bf16.msra.mxu0 0
    %172 = vmatprep.subr.bf16.mxu0 0
    %173 = vmatpush1.bf16.msra.mxu0 0
    %174 = vmatprep.subr.bf16.mxu0 0
    %175 = vmatpush1.bf16.msra.mxu0 0
    %176 = vmatprep.subr.bf16.mxu0 0
    %177 = vmatpush1.bf16.msra.mxu0 0
    %178 = vmatprep.subr.bf16.mxu0 0
    %179 = vmatpush1.bf16.msra.mxu0 0
    %180 = vmatprep.subr.bf16.mxu0 0
    %181 = vmatpush1.bf16.msra.mxu0 0
    %182 = vmatprep.subr.bf16.mxu0 0
    %183 = vmatpush1.bf16.msra.mxu0 0
    %184 = vmatprep.mubr.bf16.mxu0 0
    %185 = vmatmul.mubr.bf16.gmra.mrb[0].mxu0 %v96
    %v186 = vpop.f32.mrb[0].mxu0
    %v187 = vadd.f32 %v78, %v186
    %v188 = vpop.f32.mrb[0].mxu0
    %v189 = vpop.f32.mrb[0].mxu0
    %v190 = vadd.f32 %v78, %v189
    %v191 = vpop.f32.mrb[0].mxu0
    %192 = vmatprep.mubr.bf16.mxu0 0
    %193 = vmatmul.mubr.bf16.gmra.mrb[0].mxu0 %v97
    %v194 = vpop.f32.mrb[0].mxu0
    %v195 = vadd.f32 %v78, %v194
    %v196 = vpop.f32.mrb[0].mxu0
    %v197 = vpop.f32.mrb[0].mxu0
    %v198 = vadd.f32 %v78, %v197
    %v199 = vpop.f32.mrb[0].mxu0
    %200 = vmatprep.mubr.bf16.mxu0 0
    %201 = vmatmul.mubr.bf16.gmra.mrb[0].mxu0 %v98
    %v202 = vpop.f32.mrb[0].mxu0
    %v203 = vadd.f32 %v78, %v202
    %v204 = vpop.f32.mrb[0].mxu0
    %v205 = vpop.f32.mrb[0].mxu0
    %v206 = vadd.f32 %v78, %v205
    %v207 = vpop.f32.mrb[0].mxu0
    %208 = vmatprep.mubr.bf16.mxu0 0
    %209 = vmatmul.mubr.bf16.gmra.mrb[0].mxu0 %v99
    %v210 = vpop.f32.mrb[0].mxu0
    %v211 = vadd.f32 %v78, %v210
    %v212 = vpop.f32.mrb[0].mxu0
    %v213 = vpop.f32.mrb[0].mxu0
    %v214 = vadd.f32 %v78, %v213
    %v215 = vpop.f32.mrb[0].mxu0
    %216 = vdwg.mxu0
    %v217 = vmax.f32 %v187, 0.0
    %v218 = vmax.f32 %v190, 0.0
    %v219 = vmax.f32 %v195, 0.0
    %v220 = vmax.f32 %v198, 0.0
    %v221 = vmax.f32 %v203, 0.0
    %v222 = vmax.f32 %v206, 0.0
    %v223 = vmax.f32 %v211, 0.0
    %v224 = vmax.f32 %v214, 0.0
    %v225 = vpack.c.bf16 %v218, %v217
    %v226 = vpack.c.bf16 %v220, %v219
    %v227 = vpack.c.bf16 %v222, %v221
    %v228 = vpack.c.bf16 %v224, %v223
    %v229 = vld [vmem:[%s4] sm:$0xf]
    %v230 = vld [vmem:[%s4 + $0x4] sm:$0xf]
    %v231 = vld [vmem:[%s4 + $0x8] sm:$0xf]
    %v232 = vld [vmem:[%s4 + $0xc] sm:$0xf]
    %v237 = vunpack.c.l.b16 %v229
    %v238 = vunpack.c.l.b16 %v230
    %v239 = vunpack.c.l.b16 %v231
    %v240 = vunpack.c.l.b16 %v232
    %v241 = vpack.c.b16 %v238, %v237
    %v242 = vpack.c.b16 %v240, %v239
    %vm245 = vcmask 261120
    %v247 = vsel %vm245, %v225, 0
    %v250 = vsel %vm245, %v226, 0
    %v253 = vsel %vm245, %v227, 0
    %v256 = vsel %vm245, %v228, 0
    %258 = vmatprep.subr.bf16.mxu0 0
    %259 = vmatpush1.bf16.msra.mxu0 %v241
    %260 = vmatprep.subr.bf16.mxu0 0
    %261 = vmatpush1.bf16.msra.mxu0 %v242
    %262 = vmatprep.subr.bf16.mxu0 0
    %263 = vmatpush1.bf16.msra.mxu0 0
    %264 = vmatprep.subr.bf16.mxu0 0
    %265 = vmatpush1.bf16.msra.mxu0 0
    %266 = vmatprep.subr.bf16.mxu0 0
    %267 = vmatpush1.bf16.msra.mxu0 0
    %268 = vmatprep.subr.bf16.mxu0 0
    %269 = vmatpush1.bf16.msra.mxu0 0
    %270 = vmatprep.subr.bf16.mxu0 0
    %271 = vmatpush1.bf16.msra.mxu0 0
    %272 = vmatprep.subr.bf16.mxu0 0
    %273 = vmatpush1.bf16.msra.mxu0 0
    %274 = vmatprep.subr.bf16.mxu0 0
    %275 = vmatpush1.bf16.msra.mxu0 0
    %276 = vmatprep.subr.bf16.mxu0 0
    %277 = vmatpush1.bf16.msra.mxu0 0
    %278 = vmatprep.subr.bf16.mxu0 0
    %279 = vmatpush1.bf16.msra.mxu0 0
    %280 = vmatprep.subr.bf16.mxu0 0
    %281 = vmatpush1.bf16.msra.mxu0 0
    %282 = vmatprep.subr.bf16.mxu0 0
    %283 = vmatpush1.bf16.msra.mxu0 0
    %284 = vmatprep.subr.bf16.mxu0 0
    %285 = vmatpush1.bf16.msra.mxu0 0
    %286 = vmatprep.subr.bf16.mxu0 0
    %287 = vmatpush1.bf16.msra.mxu0 0
    %288 = vmatprep.subr.bf16.mxu0 0
    %289 = vmatpush1.bf16.msra.mxu0 0
    %290 = vmatprep.mubr.bf16.mxu0 0
    %291 = vmatmul.mubr.bf16.gmra.mrb[0].mxu0 %v247
    %v292 = vpop.f32.mrb[0].mxu0
    %v293 = vadd.f32 0.0, %v292
    %v294 = vpop.f32.mrb[0].mxu0
    %v295 = vpop.f32.mrb[0].mxu0
    %v296 = vadd.f32 0.0, %v295
    %v297 = vpop.f32.mrb[0].mxu0
    %298 = vmatprep.mubr.bf16.mxu0 0
    %299 = vmatmul.mubr.bf16.gmra.mrb[0].mxu0 %v250
    %v300 = vpop.f32.mrb[0].mxu0
    %v301 = vadd.f32 0.0, %v300
    %v302 = vpop.f32.mrb[0].mxu0
    %v303 = vpop.f32.mrb[0].mxu0
    %v304 = vadd.f32 0.0, %v303
    %v305 = vpop.f32.mrb[0].mxu0
    %306 = vmatprep.mubr.bf16.mxu0 0
    %307 = vmatmul.mubr.bf16.gmra.mrb[0].mxu0 %v253
    %v308 = vpop.f32.mrb[0].mxu0
    %v309 = vadd.f32 0.0, %v308
    %v310 = vpop.f32.mrb[0].mxu0
    %v311 = vpop.f32.mrb[0].mxu0
    %v312 = vadd.f32 0.0, %v311
    %v313 = vpop.f32.mrb[0].mxu0
    %314 = vmatprep.mubr.bf16.mxu0 0
    %315 = vmatmul.mubr.bf16.gmra.mrb[0].mxu0 %v256
    %v316 = vpop.f32.mrb[0].mxu0
    %v317 = vadd.f32 0.0, %v316
    %v318 = vpop.f32.mrb[0].mxu0
    %v319 = vpop.f32.mrb[0].mxu0
    %v320 = vadd.f32 0.0, %v319
    %v321 = vpop.f32.mrb[0].mxu0
    %322 = vdwg.mxu0
    %v323 = vunpack.c.l.bf16 %v41
    %v324 = vunpack.c.l.bf16 %v42
    %v325 = vunpack.c.l.bf16 %v43
    %v326 = vunpack.c.l.bf16 %v44
    %v327 = vunpack.c.l.bf16 %v45
    %v328 = vunpack.c.l.bf16 %v46
    %v329 = vunpack.c.l.bf16 %v47
    %v330 = vunpack.c.l.bf16 %v48
    %v331 = vadd.f32 %v323, %v324
    %v332 = vadd.f32 %v331, %v325
    %v333 = vadd.f32 %v332, %v326
    %v334 = vrot.slane %v333, 4
    %v335 = vadd.f32 %v333, %v334
    %v336 = vrot.slane %v335, 2
    %v337 = vadd.f32 %v335, %v336
    %v338 = vrot.slane %v337, 1
    %v339 = vadd.f32 %v337, %v338
    %v340 = vadd.f32 %v327, %v328
    %v341 = vadd.f32 %v340, %v329
    %v342 = vadd.f32 %v341, %v330
    %v343 = vrot.slane %v342, 4
    %v344 = vadd.f32 %v342, %v343
    %v345 = vrot.slane %v344, 2
    %v346 = vadd.f32 %v344, %v345
    %v347 = vrot.slane %v346, 1
    %v348 = vadd.f32 %v346, %v347
    %v349 = vrcp.pop 32.0
    %v350 = vmul.f32 %v339, %v349
    %v351 = vmul.f32 %v348, %v349
    %354 = vrot.lane.b32.xlu0 %v350, 64
    %v355 = vpop.permute.xlu0 %354
    %356 = vrot.lane.b32.xlu0 %v351, 64
    %v357 = vpop.permute.xlu0 %356
    %v360 = vadd.f32 %v350, %v355
    %v361 = vadd.f32 %v351, %v357
    %v362 = vmul.f32 %v360, 0.5
    %v363 = vmul.f32 %v361, 0.5
    %v366 = vrot.slane %v363, 7
    %vm367 = vcmask 1041409
    %v368 = vsel %vm367, %v366, %v362
    %370 = vrot.lane.b32.xlu0 %v368, 64
    %v371 = vpop.permute.xlu0 %370
    %vm373 = vcmask 523264
    %v374 = vsel %vm373, %v368, %v371
    %v375 = vpack.c.bf16 %v374, %v374
    %s376 = scalar_lea.vmem %s2, 64
    %v377 = vld [vmem:[%s376] sm:$0xf]
    %v378 = vld [vmem:[%s376 + $0x4] sm:$0xf]
    %v379 = vld [vmem:[%s376 + $0x8] sm:$0xf]
    %v380 = vld [vmem:[%s376 + $0xc] sm:$0xf]
    %v381 = vld [vmem:[%s376 + $0x10] sm:$0xf]
    %v382 = vld [vmem:[%s376 + $0x14] sm:$0xf]
    %v383 = vld [vmem:[%s376 + $0x18] sm:$0xf]
    %v384 = vld [vmem:[%s376 + $0x1c] sm:$0xf]
    %v385 = vld [vmem:[%s376 + $0x20] sm:$0xf]
    %v386 = vld [vmem:[%s376 + $0x24] sm:$0xf]
    %v387 = vld [vmem:[%s376 + $0x28] sm:$0xf]
    %v388 = vld [vmem:[%s376 + $0x2c] sm:$0xf]
    %v389 = vld [vmem:[%s376 + $0x30] sm:$0xf]
    %v390 = vld [vmem:[%s376 + $0x34] sm:$0xf]
    %v391 = vld [vmem:[%s376 + $0x38] sm:$0xf]
    %v392 = vld [vmem:[%s376 + $0x3c] sm:$0xf]
    %s393 = scalar_lea.vmem %s3, 1
    %v394 = vld [vmem:[%s393] sm:$0x1]
    %v396 = vlaneseq
    %v397 = vshrl.u32 %v396, 7
    %v398 = vsub.s32 0, %v397
    %v399 = vrot.slane %v394, %v398
    %v417 = vunpack.c.l.b16 %v377
    %v418 = vunpack.c.l.b16 %v378
    %v419 = vunpack.c.l.b16 %v379
    %v420 = vunpack.c.l.b16 %v380
    %v421 = vunpack.c.l.b16 %v381
    %v422 = vunpack.c.l.b16 %v382
    %v423 = vunpack.c.l.b16 %v383
    %v424 = vunpack.c.l.b16 %v384
    %v425 = vunpack.c.l.b16 %v385
    %v426 = vunpack.c.l.b16 %v386
    %v427 = vunpack.c.l.b16 %v387
    %v428 = vunpack.c.l.b16 %v388
    %v429 = vunpack.c.l.b16 %v389
    %v430 = vunpack.c.l.b16 %v390
    %v431 = vunpack.c.l.b16 %v391
    %v432 = vunpack.c.l.b16 %v392
    %v433 = vpack.c.b16 %v418, %v417
    %v434 = vpack.c.b16 %v420, %v419
    %v435 = vpack.c.b16 %v422, %v421
    %v436 = vpack.c.b16 %v424, %v423
    %v437 = vpack.c.b16 %v426, %v425
    %v438 = vpack.c.b16 %v428, %v427
    %v439 = vpack.c.b16 %v430, %v429
    %v440 = vpack.c.b16 %v432, %v431
    %449 = vmatprep.subr.bf16.mxu0 0
    %450 = vmatpush1.bf16.msra.mxu0 %v433
    %451 = vmatprep.subr.bf16.mxu0 0
    %452 = vmatpush1.bf16.msra.mxu0 %v434
    %453 = vmatprep.subr.bf16.mxu0 0
    %454 = vmatpush1.bf16.msra.mxu0 %v435
    %455 = vmatprep.subr.bf16.mxu0 0
    %456 = vmatpush1.bf16.msra.mxu0 %v436
    %457 = vmatprep.subr.bf16.mxu0 0
    %458 = vmatpush1.bf16.msra.mxu0 %v437
    %459 = vmatprep.subr.bf16.mxu0 0
    %460 = vmatpush1.bf16.msra.mxu0 %v438
    %461 = vmatprep.subr.bf16.mxu0 0
    %462 = vmatpush1.bf16.msra.mxu0 %v439
    %463 = vmatprep.subr.bf16.mxu0 0
    %464 = vmatpush1.bf16.msra.mxu0 %v440
    %465 = vmatprep.subr.bf16.mxu0 0
    %466 = vmatpush1.bf16.msra.mxu0 0
    %467 = vmatprep.subr.bf16.mxu0 0
    %468 = vmatpush1.bf16.msra.mxu0 0
    %469 = vmatprep.subr.bf16.mxu0 0
    %470 = vmatpush1.bf16.msra.mxu0 0
    %471 = vmatprep.subr.bf16.mxu0 0
    %472 = vmatpush1.bf16.msra.mxu0 0
    %473 = vmatprep.subr.bf16.mxu0 0
    %474 = vmatpush1.bf16.msra.mxu0 0
    %475 = vmatprep.subr.bf16.mxu0 0
    %476 = vmatpush1.bf16.msra.mxu0 0
    %477 = vmatprep.subr.bf16.mxu0 0
    %478 = vmatpush1.bf16.msra.mxu0 0
    %479 = vmatprep.subr.bf16.mxu0 0
    %480 = vmatpush1.bf16.msra.mxu0 0
    %481 = vmatprep.mubr.bf16.mxu0 0
    %482 = vmatmul.mubr.bf16.gmra.mrb[0].mxu0 %v375
    %v483 = vpop.f32.mrb[0].mxu0
    %v484 = vadd.f32 %v399, %v483
    %v485 = vpop.f32.mrb[0].mxu0
    %v486 = vpop.f32.mrb[0].mxu0
    %v487 = vpop.f32.mrb[0].mxu0
    %488 = vdwg.mxu0
    %v489 = vmax.f32 %v484, 0.0
    %v490 = vpack.c.bf16 %v489, %v489
    %s491 = scalar_lea.vmem %s4, 16
    %v492 = vld [vmem:[%s491] sm:$0xf]
    %v493 = vld [vmem:[%s491 + $0x4] sm:$0xf]
    %v494 = vld [vmem:[%s491 + $0x8] sm:$0xf]
    %v495 = vld [vmem:[%s491 + $0xc] sm:$0xf]
    %v496 = vld [vmem:[%s5] sm:$0x1]
    %v498 = vlaneseq
    %v499 = vshrl.u32 %v498, 7
    %v500 = vsub.s32 0, %v499
    %v501 = vrot.slane %v496, %v500
    %v507 = vunpack.c.l.b16 %v492
    %v508 = vunpack.c.l.b16 %v493
    %v509 = vunpack.c.l.b16 %v494
    %v510 = vunpack.c.l.b16 %v495
    %v511 = vpack.c.b16 %v508, %v507
    %v512 = vpack.c.b16 %v510, %v509
    %v516 = vsel %vm245, %v490, 0
    %518 = vmatprep.subr.bf16.mxu0 0
    %519 = vmatpush1.bf16.msra.mxu0 %v511
    %520 = vmatprep.subr.bf16.mxu0 0
    %521 = vmatpush1.bf16.msra.mxu0 %v512
    %522 = vmatprep.subr.bf16.mxu0 0
    %523 = vmatpush1.bf16.msra.mxu0 0
    %524 = vmatprep.subr.bf16.mxu0 0
    %525 = vmatpush1.bf16.msra.mxu0 0
    %526 = vmatprep.subr.bf16.mxu0 0
    %527 = vmatpush1.bf16.msra.mxu0 0
    %528 = vmatprep.subr.bf16.mxu0 0
    %529 = vmatpush1.bf16.msra.mxu0 0
    %530 = vmatprep.subr.bf16.mxu0 0
    %531 = vmatpush1.bf16.msra.mxu0 0
    %532 = vmatprep.subr.bf16.mxu0 0
    %533 = vmatpush1.bf16.msra.mxu0 0
    %534 = vmatprep.subr.bf16.mxu0 0
    %535 = vmatpush1.bf16.msra.mxu0 0
    %536 = vmatprep.subr.bf16.mxu0 0
    %537 = vmatpush1.bf16.msra.mxu0 0
    %538 = vmatprep.subr.bf16.mxu0 0
    %539 = vmatpush1.bf16.msra.mxu0 0
    %540 = vmatprep.subr.bf16.mxu0 0
    %541 = vmatpush1.bf16.msra.mxu0 0
    %542 = vmatprep.subr.bf16.mxu0 0
    %543 = vmatpush1.bf16.msra.mxu0 0
    %544 = vmatprep.subr.bf16.mxu0 0
    %545 = vmatpush1.bf16.msra.mxu0 0
    %546 = vmatprep.subr.bf16.mxu0 0
    %547 = vmatpush1.bf16.msra.mxu0 0
    %548 = vmatprep.subr.bf16.mxu0 0
    %549 = vmatpush1.bf16.msra.mxu0 0
    %550 = vmatprep.mubr.bf16.mxu0 0
    %551 = vmatmul.mubr.bf16.gmra.mrb[0].mxu0 %v516
    %v552 = vpop.f32.mrb[0].mxu0
    %v553 = vadd.f32 %v501, %v552
    %v554 = vpop.f32.mrb[0].mxu0
    %v555 = vpop.f32.mrb[0].mxu0
    %v556 = vpop.f32.mrb[0].mxu0
    %557 = vdwg.mxu0
    %v560 = vunpack.c.l.s4 1966171168
    %v561 = vunpack.c.0.s8 %v560
    %v562 = vlaneseq
    %v563 = vshrl.u32 %v562, 7
    %v564 = vsub.s32 %v561, %v563
    %v565 = vrot.slane %v553, %v564
    %v566 = vcombine.high %v565, %v565
    %v568 = vunpack.c.l.s4 1966171168
    %v569 = vunpack.c.0.s8 %v568
    %v570 = vlaneseq
    %v571 = vshrl.u32 %v570, 7
    %v572 = vsub.s32 %v569, %v571
    %v573 = vrot.slane %v565, %v572
    %v575 = vunpack.c.l.s4 1966171168
    %v576 = vunpack.c.0.s8 %v575
    %v577 = vlaneseq
    %v578 = vshrl.u32 %v577, 7
    %v579 = vsub.s32 %v576, %v578
    %v580 = vrot.slane %v566, %v579
    %v581 = vlaneseq
    %v582 = vshrl.u32 %v581, 7
    %v583 = vsub.s32 0, %v582
    %v584 = vrot.slane %v573, %v583
    %v585 = vlaneseq
    %v586 = vshrl.u32 %v585, 7
    %v587 = vsub.s32 0, %v586
    %v588 = vrot.slane %v580, %v587
    %v591 = vadd.f32 %v293, %v584
    %v592 = vadd.f32 %v296, %v584
    %v593 = vadd.f32 %v301, %v584
    %v594 = vadd.f32 %v304, %v584
    %v595 = vadd.f32 %v309, %v588
    %v596 = vadd.f32 %v312, %v588
    %v597 = vadd.f32 %v317, %v588
    %v598 = vadd.f32 %v320, %v588
    %v599 = vtanh.pop %v591
    %v600 = vtanh.pop %v592
    %v601 = vtanh.pop %v593
    %v602 = vtanh.pop %v594
    %v603 = vtanh.pop %v595
    %v604 = vtanh.pop %v596
    %v605 = vtanh.pop %v597
    %v606 = vtanh.pop %v598
    %v607 = vpack.c.bf16 %v600, %v599
    %v608 = vpack.c.bf16 %v602, %v601
    %v609 = vpack.c.bf16 %v604, %v603
    %v610 = vpack.c.bf16 %v606, %v605
    %v615 = vunpack.c.l.b16 %v607
    %v616 = vunpack.c.h.b16 %v607
    %v617 = vunpack.c.l.b16 %v608
    %v618 = vunpack.c.h.b16 %v608
    %v619 = vunpack.c.l.b16 %v609
    %v620 = vunpack.c.h.b16 %v609
    %v621 = vunpack.c.l.b16 %v610
    %v622 = vunpack.c.h.b16 %v610
    %v623 = vpack.c.b16 %v615, %v615
    %v624 = vpack.c.b16 %v616, %v616
    %v625 = vpack.c.b16 %v617, %v617
    %v626 = vpack.c.b16 %v618, %v618
    %v627 = vpack.c.b16 %v619, %v619
    %v628 = vpack.c.b16 %v620, %v620
    %v629 = vpack.c.b16 %v621, %v621
    %v630 = vpack.c.b16 %v622, %v622
    %v639 = vmul.bf16 %v49, %v623
    %v640 = vmul.bf16 %v50, %v624
    %v641 = vmul.bf16 %v51, %v625
    %v642 = vmul.bf16 %v52, %v626
    %v643 = vmul.bf16 %v53, %v627
    %v644 = vmul.bf16 %v54, %v628
    %v645 = vmul.bf16 %v55, %v629
    %v646 = vmul.bf16 %v56, %v630
    %v647 = vadd.bf16 %v41, %v639
    %v648 = vadd.bf16 %v42, %v640
    %v649 = vadd.bf16 %v43, %v641
    %v650 = vadd.bf16 %v44, %v642
    %v651 = vadd.bf16 %v45, %v643
    %v652 = vadd.bf16 %v46, %v644
    %v653 = vadd.bf16 %v47, %v645
    %v654 = vadd.bf16 %v48, %v646
    %655 = vst [vmem:[#allocation2] sm:$0xf] %v647
    %656 = vst [vmem:[#allocation2 + $0x4] sm:$0xf] %v648
    %657 = vst [vmem:[#allocation2 + $0x8] sm:$0xf] %v649
    %658 = vst [vmem:[#allocation2 + $0xc] sm:$0xf] %v650
    %659 = vst [vmem:[#allocation2 + $0x10] sm:$0xf] %v651
    %660 = vst [vmem:[#allocation2 + $0x14] sm:$0xf] %v652
    %661 = vst [vmem:[#allocation2 + $0x18] sm:$0xf] %v653
    %662 = vst [vmem:[#allocation2 + $0x1c] sm:$0xf] %v654
    // Predicated region
    $region26: #{tpu_custom_call.1} parent=1 // pred_check
      _
    $region27: #{tpu_custom_call.1} parent=1 // pred_check_branch
      %664 = sbr.rel (0) target = $region29
    $region28: #{tpu_custom_call.1} parent=1 // pred_region
      %s666 = ssub.s32 512, 512
      %667 = vsyncadd [#allocation3], %s666
      %s668 = sshll.u32 [#allocation2], 4
      %s669 = int_to_ptr.vmem [resolvable:$true] %s668
      %674 = dma.vmem_to_hbm [thread:$0]  %s669, 512, %s6, [#allocation3], 64, 64, 4
    $region29: #{tpu_custom_call.1} parent=1 // pred_fallthru
      _
    // Predicated region
    $region30: #{tpu_custom_call.1} parent=1 // pred_check
      _
    $region31: #{tpu_custom_call.1} parent=1 // pred_check_branch
      %676 = sbr.rel (0) target = $region33
    $region32: #{tpu_custom_call.1} parent=1 // pred_region
      %677 = dma.done [#allocation3], 512
    $region33: #{tpu_custom_call.1} parent=1 // pred_fallthru
      _
    %678 = vsyncpa [#allocation3], 1

</llo_original>
